<compile_context>
chip_gen: v5e
topology: v5e:2x2
jax: 0.10.0
libtpu: 0.0.40
codegen_flags: <defaults>
</compile_context>

<pallas_src>
import functools

import jax
import jax.numpy as jnp
from jax import lax
from jax.experimental import pallas as pl
from jax.experimental.pallas import tpu as pltpu


ENTROPIC_SCALE = 10.0  # matches self.entropic_scale = 10 in the module


def _round_up(x, m):
    return ((x + m - 1) // m) * m


def _dismax_nll_kernel(scale_ref, logits_ref, targets_ref, nll_ref, *, batch_size):
    """Per-row negative log-likelihood for one batch tile.

    scale_ref  : (1, 1) float32 SMEM scalar (entropic scale; 10 train / 1 eval)
    logits_ref : (TILE_B, C) VMEM tile (any float dtype; upcast to f32 here)
    targets_ref: (TILE_B, 1) int32 VMEM tile (class index per row)
    nll_ref    : (TILE_B, 1) float32 VMEM output tile (masked to 0 for padded rows)
    """
    i = pl.program_id(0)
    logits = logits_ref[...].astype(jnp.float32)
    tb, c = logits.shape

    scale = scale_ref[0, 0]
    scaled = scale * logits                                    # scale * logits

    # Numerically-stable logsumexp (row-wise).
    row_max = jnp.max(scaled, axis=-1, keepdims=True)          # (TILE_B, 1)
    sum_exp = jnp.sum(jnp.exp(scaled - row_max), axis=-1, keepdims=True)
    lse = row_max + jnp.log(sum_exp)                           # (TILE_B, 1)

    # Gather scaled logit at the target class with a lane-index select.
    col_ids = lax.broadcasted_iota(jnp.int32, (tb, c), 1)      # (TILE_B, C)
    picked = jnp.sum(
        jnp.where(col_ids == targets_ref[...], scaled, 0.0),
        axis=-1, keepdims=True,
    )                                                          # (TILE_B, 1)

    per_example = lse - picked                                 # -log p_target

    # Zero out rows that are batch padding so the host-side sum is exact.
    row_ids = i * tb + lax.broadcasted_iota(jnp.int32, (tb, 1), 0)
    nll_ref[...] = jnp.where(row_ids < batch_size, per_example, 0.0)


def dismax_loss_second_part(logits, targets, *, training=True,
                            entropic_scale=ENTROPIC_SCALE):
    """JAX wrapper mirroring DisMaxLossSecondPart.forward (regularization=None)."""
    batch_size, num_classes = logits.shape

    # --- tile sizing: cap each logits buffer around 4 MiB (double-buffered => ~8 MiB),
    # safely under the scoped-VMEM limit on v5e/v6e/v7x; always a multiple of 8 rows.
    itemsize = jnp.dtype(logits.dtype).itemsize
    per_row_bytes = max(1, num_classes * itemsize)
    tile_b = max(8, min(512, (4 * 1024 * 1024) // per_row_bytes))
    tile_b = max(8, (tile_b // 8) * 8)
    tile_b = min(tile_b, _round_up(batch_size, 8))
    b_padded = _round_up(batch_size, tile_b)
    num_tiles = b_padded // tile_b

    # --- pad batch if needed (padded rows are masked to 0 inside the kernel).
    # NOTE: logits dtype is preserved (bf16 stays bf16 through HBM; upcast in-kernel).
    targets_2d = targets.astype(jnp.int32).reshape(batch_size, 1)
    if b_padded > batch_size:
        pad = b_padded - batch_size
        logits_in = jnp.pad(logits, ((0, pad), (0, 0)))
        targets_in = jnp.pad(targets_2d, ((0, pad), (0, 0)))
    else:
        logits_in = logits
        targets_in = targets_2d

    # --- scale as a runtime SMEM scalar: one compiled kernel for train and eval.
    scale_value = float(entropic_scale) if training else 1.0
    scale_arr = jnp.full((1, 1), scale_value, dtype=jnp.float32)

    kernel = functools.partial(_dismax_nll_kernel, batch_size=batch_size)

    nll = pl.pallas_call(
        kernel,
        out_shape=jax.ShapeDtypeStruct((b_padded, 1), jnp.float32),
        grid=(num_tiles,),
        in_specs=[
            pl.BlockSpec(memory_space=pltpu.SMEM),                    # scale scalar
            pl.BlockSpec((tile_b, num_classes), lambda i: (i, 0)),    # logits tile
            pl.BlockSpec((tile_b, 1), lambda i: (i, 0)),              # targets tile
        ],
        out_specs=pl.BlockSpec((tile_b, 1), lambda i: (i, 0)),        # per-row NLL
        compiler_params=pltpu.CompilerParams(
            dimension_semantics=("parallel",),       # batch tiles independent (megacore)
            vmem_limit_bytes=32 * 1024 * 1024,       # headroom on v5e's 16 MiB default
        ),
    )(scale_arr, logits_in, targets_in)

    # Final reduction + mean (multiply by precomputed 1/B; padded rows are already 0).
    return jnp.sum(nll[:, 0]) * (1.0 / batch_size)


def _reference_loss(logits, targets, *, training=True,
                    entropic_scale=ENTROPIC_SCALE):
    """Pure-JAX reference of the PyTorch forward (regularization=None)."""
    scale = entropic_scale if training else 1.0
    probs = jax.nn.softmax(scale * logits.astype(jnp.float32), axis=1)
    p_at_t = probs[jnp.arange(logits.shape[0]), targets]
    return -jnp.mean(jnp.log(p_at_t))


if __name__ == "__main__":
    # Synthetic "model classifier" output: logits of shape (batch, num_classes).
    # (At this toy size the kernel is overhead-dominated; it exists for correctness.)
    batch_size = 8
    num_classes = 16

    key = jax.random.PRNGKey(0)
    k_logits, k_targets = jax.random.split(key)
    logits = jax.random.normal(k_logits, (batch_size, num_classes), dtype=jnp.float32)
    targets = jax.random.randint(k_targets, (batch_size,), 0, num_classes,
                                 dtype=jnp.int32)

    # Training path (entropic_scale = 10), regularization=None.
    loss = dismax_loss_second_part(logits, targets, training=True)
    loss = jax.block_until_ready(loss)
    ref = _reference_loss(logits, targets, training=True)
    assert jnp.allclose(loss, ref, rtol=1e-5, atol=1e-5), (loss, ref)

    # Eval path (plain softmax, scale = 1) — reuses the same compiled kernel.
    loss_eval = dismax_loss_second_part(logits, targets, training=False)
    loss_eval = jax.block_until_ready(loss_eval)
    ref_eval = _reference_loss(logits, targets, training=False)
    assert jnp.allclose(loss_eval, ref_eval, rtol=1e-5, atol=1e-5), (loss_eval, ref_eval)

    print("KERNEL_OK")
</pallas_src>

<mosaic_0001>
module attributes {stable_mosaic.version = 11 : i64} {
  func.func @_dismax_nll_kernel(%arg0: i32, %arg1: memref<1x1xf32, #tpu.memory_space<smem>>, %arg2: memref<8x16xf32, #tpu.memory_space<vmem>>, %arg3: memref<8x1xi32, #tpu.memory_space<vmem>>, %arg4: memref<8x1xf32, #tpu.memory_space<vmem>>) attributes {dimension_semantics = [#tpu.dimension_semantics<parallel>], iteration_bounds = array<i64: 1>, scalar_prefetch = 0 : i64, scratch_operands = 0 : i64, tpu.core_type = #tpu.core_type<tc>, window_params = [{transform_indices = @transform_0, window_bounds = array<i64: 1, 1>}, {transform_indices = @transform_1, window_bounds = array<i64: 8, 16>}, {transform_indices = @transform_2, window_bounds = array<i64: 8, 1>}, {transform_indices = @transform_3, window_bounds = array<i64: 8, 1>}]} {
    %c0 = arith.constant 0 : index
    %c0_0 = arith.constant 0 : index
    %0 = vector.load %arg2[%c0, %c0_0] : memref<8x16xf32, #tpu.memory_space<vmem>>, vector<8x16xf32>
    %c0_1 = arith.constant 0 : index
    %c0_2 = arith.constant 0 : index
    %1 = memref.load %arg1[%c0_1, %c0_2] : memref<1x1xf32, #tpu.memory_space<smem>>
    %2 = vector.broadcast %1 : f32 to vector<8x16xf32>
    %3 = arith.mulf %2, %0 : vector<8x16xf32>
    %cst = arith.constant dense<0xFF800000> : vector<8xf32>
    %4 = vector.multi_reduction <maximumf>, %3, %cst [1] : vector<8x16xf32> to vector<8xf32>
    %5 = vector.shape_cast %4 : vector<8xf32> to vector<8x1xf32>
    %6 = vector.broadcast %5 : vector<8x1xf32> to vector<8x16xf32>
    %7 = arith.subf %3, %6 : vector<8x16xf32>
    %8 = math.exp %7 : vector<8x16xf32>
    %cst_3 = arith.constant dense<0.000000e+00> : vector<8xf32>
    %9 = vector.multi_reduction <add>, %8, %cst_3 [1] : vector<8x16xf32> to vector<8xf32>
    %10 = vector.shape_cast %9 : vector<8xf32> to vector<8x1xf32>
    %11 = math.log %10 : vector<8x1xf32>
    %12 = arith.addf %5, %11 : vector<8x1xf32>
    %13 = tpu.iota {dimensions = array<i32: 1>} : vector<8x16xi32>
    %c0_4 = arith.constant 0 : index
    %c0_5 = arith.constant 0 : index
    %14 = vector.load %arg3[%c0_4, %c0_5] : memref<8x1xi32, #tpu.memory_space<vmem>>, vector<8x1xi32>
    %15 = vector.broadcast %14 : vector<8x1xi32> to vector<8x16xi32>
    %16 = arith.cmpi eq, %13, %15 : vector<8x16xi32>
    %cst_6 = arith.constant 0.000000e+00 : f32
    %17 = vector.broadcast %cst_6 : f32 to vector<8x16xf32>
    %18 = arith.select %16, %3, %17 : vector<8x16xi1>, vector<8x16xf32>
    %cst_7 = arith.constant dense<0.000000e+00> : vector<8xf32>
    %19 = vector.multi_reduction <add>, %18, %cst_7 [1] : vector<8x16xf32> to vector<8xf32>
    %20 = vector.shape_cast %19 : vector<8xf32> to vector<8x1xf32>
    %21 = arith.subf %12, %20 : vector<8x1xf32>
    %c8_i32 = arith.constant 8 : i32
    %22 = arith.muli %arg0, %c8_i32 : i32
    %23 = tpu.iota {dimensions = array<i32: 0>} : vector<8x1xi32>
    %24 = vector.broadcast %22 : i32 to vector<8x1xi32>
    %25 = arith.addi %24, %23 : vector<8x1xi32>
    %c8_i32_8 = arith.constant 8 : i32
    %26 = vector.broadcast %c8_i32_8 : i32 to vector<8x1xi32>
    %27 = arith.cmpi slt, %25, %26 : vector<8x1xi32>
    %cst_9 = arith.constant 0.000000e+00 : f32
    %28 = vector.broadcast %cst_9 : f32 to vector<8x1xf32>
    %29 = arith.select %27, %21, %28 : vector<8x1xi1>, vector<8x1xf32>
    %c0_10 = arith.constant 0 : index
    %c0_11 = arith.constant 0 : index
    %30 = vector.load %arg4[%c0_10, %c0_11] : memref<8x1xf32, #tpu.memory_space<vmem>>, vector<8x1xf32>
    tpu.vector_store %arg4[%c0_10, %c0_11], %29 {strides = array<i32>} : memref<8x1xf32, #tpu.memory_space<vmem>>, vector<8x1xf32>,
    return
  }
  func.func @transform_0(%arg0: i32) -> (i32, i32) {
    %c0_i32 = arith.constant 0 : i32
    %c0_i32_0 = arith.constant 0 : i32
    %c0_i32_1 = arith.constant 0 : i32
    return %c0_i32, %c0_i32_0 : i32, i32
  }
  func.func @transform_1(%arg0: i32) -> (i32, i32) {
    %c0_i32 = arith.constant 0 : i32
    %c0_i32_0 = arith.constant 0 : i32
    return %arg0, %c0_i32 : i32, i32
  }
  func.func @transform_2(%arg0: i32) -> (i32, i32) {
    %c0_i32 = arith.constant 0 : i32
    %c0_i32_0 = arith.constant 0 : i32
    return %arg0, %c0_i32 : i32, i32
  }
  func.func @transform_3(%arg0: i32) -> (i32, i32) {
    %c0_i32 = arith.constant 0 : i32
    %c0_i32_0 = arith.constant 0 : i32
    return %arg0, %c0_i32 : i32, i32
  }
}

</mosaic_0001>

<llo_original>
// kernel: tpu_custom_call.1
$region0: #{tpu_custom_call.1}
  #allocation0 [shape = 'u32[]', space=smem, size = 0x4, offset = 0x4, fixed_abs, tag = 'smem constant byte address 0x4 - core index']
  #allocation1 [shape = 'u32[72,128]{1,0:T(1,128)}', space=vmem, size = 0x9000, scoped, tag = 'internal scratch']
  #allocation2 [shape = 'f32[1,1]{1,0:T(1,128)S(6)}', space=smem, size = 0x200, scoped, tag = 'scoped memory for tpu_custom_call.1']
  %s0 = inlined_call_operand.<no memory space> [shape: f32[1,1], index: 0, kind: input, shape index: {}]
  %s1 = inlined_call_operand.vmem [shape: f32[8,16], index: 1, kind: input, shape index: {}]
  %s2 = inlined_call_operand.vmem [shape: s32[8,1], index: 2, kind: input, shape index: {}]
  %s3 = inlined_call_operand.vmem [shape: f32[8,1], index: 3, kind: output, shape index: {}]
  %s4 = sld [smem:[#allocation0]]
  $region22: #{tpu_custom_call.1} parent=0
    _
  %s6 = ssub.s32 1, %s4
  %s7 = scalar_select 0, %s6, %s4
  %8 = sst [smem:[#allocation2]] %s0
  // Predicated region
  $region2: #{tpu_custom_call.1} parent=0 // pred_check
    _
  $region3: #{tpu_custom_call.1} parent=0 // pred_check_branch
    %10 = sbr.rel (0) target = $region5
  $region4: #{tpu_custom_call.1} parent=0 // pred_region
    _
  $region5: #{tpu_custom_call.1} parent=0 // pred_fallthru
    _
  // Predicated region
  $region6: #{tpu_custom_call.1} parent=0 // pred_check
    _
  $region7: #{tpu_custom_call.1} parent=0 // pred_check_branch
    %12 = sbr.rel (0) target = $region9
  $region8: #{tpu_custom_call.1} parent=0 // pred_region
    _
  $region9: #{tpu_custom_call.1} parent=0 // pred_fallthru
    _
  // Predicated region
  $region10: #{tpu_custom_call.1} parent=0 // pred_check
    _
  $region11: #{tpu_custom_call.1} parent=0 // pred_check_branch
    %14 = sbr.rel (0) target = $region13
  $region12: #{tpu_custom_call.1} parent=0 // pred_region
    _
  $region13: #{tpu_custom_call.1} parent=0 // pred_fallthru
    _
  %v15 = vld [vmem:[%s1] sm:$0xff]
  %s16 = sld [smem:[#allocation2]]
  %v17 = vstv %s16
  %v18 = vmul.f32 %v17, %v15
  %vm19 = vcmask 130048
  %v20 = vsel %vm19, %v18, -inf
  %21 = vmax.xlane.f32.xlu0 %v20
  %v22 = vpop.xlane.xlu0 %21
  %v23 = vsub.f32 %v18, %v22
  %v24 = vmul.f32 %v23, 1.442695
  %v25 = vpow.pop %v24
  %v26 = vsel %vm19, %v25, 0.0
  %27 = vadd.xlane.f32.xlu0 %v26
  %v28 = vpop.xlane.xlu0 %27
  %v29 = vlog2.pop %v28
  %v30 = vmul.f32 %v29, 0.6931472
  %v31 = vadd.f32 %v22, %v30
  %v32 = vlaneseq
  %v33 = vand.u32 %v32, 127
  %v34 = vld [vmem:[%s2] sm:$0xff]
  %35 = vset.pattern.permute.xlu0 0
  %36 = vperm.xlu0 %35, %v34
  %v37 = vpop.permute.xlu0 %36
  %vm38 = vcmp.eq.s32.totalorder %v33, %v37
  %v39 = vsel %vm38, %v18, 0.0
  %v40 = vsel %vm19, %v39, 0.0
  %41 = vadd.xlane.f32.xlu0 %v40
  %v42 = vpop.xlane.xlu0 %41
  %v43 = vsub.f32 %v31, %v42
  %s44 = smul.u32 0, 8
  %v45 = vlaneseq
  %v46 = vshrl.u32 %v45, 7
  %v47 = vstv %s44
  %v48 = vadd.s32 %v47, %v46
  %vm49 = vcmp.lt.s32.totalorder %v48, 8
  %v50 = vsel %vm49, %v43, 0.0
  %vm51 = vcmask 7168
  %52 = vst.msk [vmem:[%s3] sm:$0xff] %vm51, %v50
  // Predicated region
  $region14: #{tpu_custom_call.1} parent=0 // pred_check
    _
  $region15: #{tpu_custom_call.1} parent=0 // pred_check_branch
    %54 = sbr.rel (0) target = $region17
  $region16: #{tpu_custom_call.1} parent=0 // pred_region
    _
  $region17: #{tpu_custom_call.1} parent=0 // pred_fallthru
    _
  // Predicated region
  $region18: #{tpu_custom_call.1} parent=0 // pred_check
    _
  $region19: #{tpu_custom_call.1} parent=0 // pred_check_branch
    %56 = sbr.rel (0) target = $region21
  $region20: #{tpu_custom_call.1} parent=0 // pred_region
    _
  $region21: #{tpu_custom_call.1} parent=0 // pred_fallthru
    _

</llo_original>
